<compile_context>
chip_gen: v5e
topology: v5e:2x2
jax: 0.10.0
libtpu: 0.0.40
codegen_flags: <defaults>
</compile_context>

<pallas_src>
import jax
import jax.numpy as jnp
from jax import lax
from jax.experimental import pallas as pl
from jax.experimental.pallas import tpu as pltpu


def _round_up(x, m):
    return (x + m - 1) // m * m


def _vmem_capacity_bytes():
    """Per-TensorCore VMEM capacity (128 MiB v5e/v6e, 64 MiB v7x)."""
    try:
        cap = int(pltpu.get_tpu_info().vmem_capacity_bytes)
        if cap > 0:
            return cap
    except Exception:
        pass
    return 64 << 20          # conservative fallback: fits every generation


# ---------------------------------------------------------------------------
# Kernels
# ---------------------------------------------------------------------------
def _conv2x2_s1_kernel(x_ref, w_ref, b_ref, o_ref):
    """stride=1 2x2 conv as four accumulated MXU dots (no lane-axis concat).

    x_ref: (1, TH+1, W_p, Cin_p)   input row window incl. 1-row halo
    w_ref: (4, Cin_p, Cout_p)      per-tap weights, tap index = ky*2 + kx
    b_ref: (1, Cout_p)             bias (f32)
    o_ref: (1, TH, Wo_p, Cout_p)   output row tile
    """
    th, wo, cout = o_ref.shape[1], o_ref.shape[2], o_ref.shape[3]
    cin = x_ref.shape[3]

    acc = None
    for t, (ky, kx) in enumerate(((0, 0), (0, 1), (1, 0), (1, 1))):
        # Contiguous shifted window read per tap; no whole-block copies and no
        # lane-axis concatenation (expensive when Cin_p < 128).
        tap = x_ref[0, ky:ky + th, kx:kx + wo, :].reshape(th * wo, cin)
        d = jnp.dot(tap, w_ref[t], preferred_element_type=jnp.float32)
        acc = d if acc is None else acc + d
    acc = acc + b_ref[...].astype(jnp.float32)
    o_ref[0] = acc.reshape(th, wo, cout).astype(o_ref.dtype)


def _patch_matmul_kernel(x_ref, w_ref, b_ref, o_ref):
    """stride>=2 path: wrapper space-to-depths the input, so the conv is one
    contiguous matmul (patch embedding) — no strided reads in-kernel.

    x_ref: (TH, Wo_p, 4*Cin_p);  w_ref: (4*Cin_p, Cout_p);  b_ref: (1, Cout_p)
    o_ref: (TH, Wo_p, Cout_p)
    """
    th, wo, cout = o_ref.shape
    k = x_ref.shape[2]
    acc = jnp.dot(x_ref[...].reshape(th * wo, k), w_ref[...],
                  preferred_element_type=jnp.float32)
    acc = acc + b_ref[...].astype(jnp.float32)
    o_ref[...] = acc.reshape(th, wo, cout).astype(o_ref.dtype)


# ---------------------------------------------------------------------------
# Wrapper
# ---------------------------------------------------------------------------
def conv2x2_forward(x, weight, bias, *, stride=1, compute_dtype=None,
                    row_tile=None, data_format="NCHW"):
    """Pallas forward for nn.Conv2d(kernel_size=2, stride=stride, padding=0).

    x: (N, Cin, H, W) for data_format="NCHW" or (N, H, W, Cin) for "NHWC".
    weight: (Cout, Cin, 2, 2);  bias: (Cout,).
    Returns the conv output in the same data_format.

    compute_dtype=None keeps the input dtype (exact parity with the f32 module);
    compute_dtype=jnp.bfloat16 is the recommended fast path on v5e/v6e/v7x
    (native bf16 MXU, half the activation DMA bytes, f32 accumulation).
    """
    if data_format not in ("NCHW", "NHWC"):
        raise ValueError(f"bad data_format: {data_format}")
    if data_format == "NCHW":
        n, cin, h, w = x.shape
    else:
        n, h, w, cin = x.shape
    cout = weight.shape[0]
    out_dtype = x.dtype
    cdtype = jnp.dtype(compute_dtype) if compute_dtype is not None else jnp.dtype(out_dtype)
    in_item = cdtype.itemsize
    out_item = jnp.dtype(out_dtype).itemsize

    ho = (h - 2) // stride + 1
    wo = (w - 2) // stride + 1

    # Sublane pack of the compute dtype: 8 (f32) / 16 (bf16) / 32 (int8, fp8).
    sub = max(8, 32 // in_item)
    cin_p = _round_up(cin, sub)
    # NOTE: lane-dense output (unmasked vst, full MXU N).  For Cout << 128 the
    # padded lanes are a pure HBM-writeback tax; sliced off in the wrapper.
    cout_p = _round_up(cout, 128)
    wo_p = _round_up(wo, sub)        # free (TH,Wo,K)<->(TH*Wo,K) relayout

    cap = _vmem_capacity_bytes()
    tile_budget = max(4 << 20, min(cap // 5, 32 << 20))   # ~25 MiB v5e/v6e, ~12 MiB v7x
    hard_cap = (cap * 7) // 8                              # leave Mosaic headroom

    # Fused / padded weights and bias.
    w_hwio = jnp.transpose(weight, (2, 3, 1, 0))           # (2, 2, Cin, Cout)
    w_hwio = jnp.pad(w_hwio, ((0, 0), (0, 0), (0, cin_p - cin), (0, cout_p - cout)))
    b2d = jnp.pad(bias, (0, cout_p - cout)).reshape(1, cout_p).astype(jnp.float32)

    if stride == 1:
        # ------------------------------------------------------------------
        # stride=1: halo row tiling + 4 accumulated dots per tile.
        # ------------------------------------------------------------------
        w_taps = w_hwio.reshape(4, cin_p, cout_p).astype(cdtype)
        w_p = max(w, wo_p + 1)                 # the kx=1 tap needs wo_p+1 cols

        if row_tile is None:
            per_row = (2 * (w_p * cin_p * in_item + wo_p * cout_p * out_item)
                       + wo_p * cout_p * 4                 # f32 accumulator
                       + 2 * wo_p * cin_p * in_item)       # tap temporaries
            row_tile = max(8, tile_budget // max(per_row, 1))
        th = max(1, min(int(row_tile), ho))
        if n * ((ho + th - 1) // th) < 2 and ho >= 2:
            th = (ho + 1) // 2                 # >= 2 grid slices for v7x's 2 TCs
        ho_p = _round_up(ho, th)
        n_row = ho_p // th
        th_in = th + 1                         # 1-row halo for the 2x2 window
        h_p = max(h, ho_p + 1)

        # One fused pad(+transpose) layout pass.
        # TODO(synk): keep activations NHWC end-to-end in the surrounding model
        # (data_format="NHWC") so the NCHW transpose never touches HBM.
        x_nhwc = x if data_format == "NHWC" else jnp.transpose(x, (0, 2, 3, 1))
        x_pad = jnp.pad(x_nhwc, ((0, 0), (0, h_p - h), (0, w_p - w),
                                 (0, cin_p - cin))).astype(cdtype)

        if n_row == 1:
            x_spec = pl.BlockSpec((1, h_p, w_p, cin_p), lambda b, j: (b, 0, 0, 0))
            in_blk = h_p * w_p * cin_p * in_item
        else:
            # Overlapping row windows (1-row halo) -> element-indexed H dim.
            x_spec = pl.BlockSpec((1, pl.Element(th_in), w_p, cin_p),
                                  lambda b, j: (b, j * th, 0, 0))
            in_blk = th_in * w_p * cin_p * in_item

        out_blk = th * wo_p * cout_p * out_item
        tmp = th * wo_p * (cout_p * 4 + 2 * cin_p * in_item)
        fixed = 2 * (w_taps.size * in_item + b2d.size * 4)   # double-buffered consts
        need = 2 * (in_blk + out_blk) + tmp + fixed + (2 << 20)
        vmem_limit = int(min(max(need, min(32 << 20, hard_cap)), hard_cap))

        flops = 2 * n * ho_p * wo_p * 4 * cin_p * cout_p
        bytes_accessed = int(x_pad.size * in_item + w_taps.size * in_item
                             + b2d.size * 4 + n * ho_p * wo_p * cout_p * out_item)

        out_pad = pl.pallas_call(
            _conv2x2_s1_kernel,
            out_shape=jax.ShapeDtypeStruct((n, ho_p, wo_p, cout_p), out_dtype),
            grid_spec=pltpu.PrefetchScalarGridSpec(
                num_scalar_prefetch=0,
                grid=(n, n_row),
                in_specs=[
                    x_spec,
                    pl.BlockSpec((4, cin_p, cout_p), lambda b, j: (0, 0, 0)),
                    pl.BlockSpec((1, cout_p), lambda b, j: (0, 0)),
                ],
                out_specs=pl.BlockSpec((1, th, wo_p, cout_p),
                                       lambda b, j: (b, j, 0, 0)),
            ),
            compiler_params=pltpu.CompilerParams(
                dimension_semantics=("parallel", "parallel"),
                vmem_limit_bytes=vmem_limit),
            cost_estimate=pl.CostEstimate(flops=flops, transcendentals=0,
                                          bytes_accessed=bytes_accessed),
        )(x_pad, w_taps, b2d)

        out = out_pad[:, :ho, :wo, :cout]            # drop spatial/lane padding
        out = out.reshape(n, ho, wo, cout)

    else:
        # ------------------------------------------------------------------
        # stride>=2: space-to-depth in the wrapper -> one contiguous matmul,
        # batch folded into the row/M axis, no halo, no strided reads.
        # ------------------------------------------------------------------
        s = stride
        kp = 4 * cin_p
        w2d = w_hwio.reshape(kp, cout_p).astype(cdtype)

        h_used = (ho - 1) * s + 2
        w_used = (wo - 1) * s + 2
        if data_format == "NCHW":
            x_c = x[:, :, :h_used, :w_used]
            x_c = jnp.pad(x_c, ((0, 0), (0, cin_p - cin),
                                (0, s * ho - h_used), (0, s * wo - w_used)))
            x_r = x_c.reshape(n, cin_p, ho, s, wo, s)
            x_r = jnp.transpose(x_r, (0, 2, 4, 3, 5, 1))    # (n,ho,wo,ky,kx,cin)
        else:
            x_c = x[:, :h_used, :w_used, :]
            x_c = jnp.pad(x_c, ((0, 0), (0, s * ho - h_used),
                                (0, s * wo - w_used), (0, cin_p - cin)))
            x_r = x_c.reshape(n, ho, s, wo, s, cin_p)
            x_r = jnp.transpose(x_r, (0, 1, 3, 2, 4, 5))    # (n,ho,wo,ky,kx,cin)
        x_s2d = x_r[:, :, :, :2, :2, :].reshape(n * ho, wo, kp)

        rows = n * ho
        if row_tile is None:
            per_row = (2 * (wo_p * kp * in_item + wo_p * cout_p * out_item)
                       + wo_p * cout_p * 4)
            row_tile = max(8, tile_budget // max(per_row, 1))
        th = max(1, min(int(row_tile), rows))
        if (rows + th - 1) // th < 2 and rows >= 2:
            th = (rows + 1) // 2               # >= 2 grid slices for v7x's 2 TCs
        rows_p = _round_up(rows, th)
        n_row = rows_p // th

        x_flat = jnp.pad(x_s2d, ((0, rows_p - rows), (0, wo_p - wo),
                                 (0, 0))).astype(cdtype)

        in_blk = th * wo_p * kp * in_item
        out_blk = th * wo_p * cout_p * out_item
        tmp = th * wo_p * cout_p * 4
        fixed = 2 * (w2d.size * in_item + b2d.size * 4)
        need = 2 * (in_blk + out_blk) + tmp + fixed + (2 << 20)
        vmem_limit = int(min(max(need, min(32 << 20, hard_cap)), hard_cap))

        flops = 2 * rows_p * wo_p * kp * cout_p
        bytes_accessed = int(x_flat.size * in_item + w2d.size * in_item
                             + b2d.size * 4 + rows_p * wo_p * cout_p * out_item)

        out_pad = pl.pallas_call(
            _patch_matmul_kernel,
            out_shape=jax.ShapeDtypeStruct((rows_p, wo_p, cout_p), out_dtype),
            grid_spec=pltpu.PrefetchScalarGridSpec(
                num_scalar_prefetch=0,
                grid=(n_row,),
                in_specs=[
                    pl.BlockSpec((th, wo_p, kp), lambda i: (i, 0, 0)),
                    pl.BlockSpec((kp, cout_p), lambda i: (0, 0)),
                    pl.BlockSpec((1, cout_p), lambda i: (0, 0)),
                ],
                out_specs=pl.BlockSpec((th, wo_p, cout_p), lambda i: (i, 0, 0)),
            ),
            compiler_params=pltpu.CompilerParams(
                dimension_semantics=("parallel",),
                vmem_limit_bytes=vmem_limit),
            cost_estimate=pl.CostEstimate(flops=flops, transcendentals=0,
                                          bytes_accessed=bytes_accessed),
        )(x_flat, w2d, b2d)

        out = out_pad[:rows, :wo, :cout].reshape(n, ho, wo, cout)

    if data_format == "NCHW":
        out = jnp.transpose(out, (0, 3, 1, 2))
    return out


def _init_params(key, in_channels, out_channels):
    # Deterministic init mimicking PyTorch Conv2d default (uniform +/- 1/sqrt(fan_in)).
    kw, kb = jax.random.split(key)
    fan_in = in_channels * 2 * 2
    bound = 1.0 / jnp.sqrt(fan_in)
    weight = jax.random.uniform(
        kw, (out_channels, in_channels, 2, 2), jnp.float32, -bound, bound)
    bias = jax.random.uniform(kb, (out_channels,), jnp.float32, -bound, bound)
    return weight, bias


if __name__ == "__main__":
    key = jax.random.PRNGKey(0)
    kx, kparams = jax.random.split(key)

    N, CIN, COUT, H, W = 2, 4, 8, 16, 16
    x = jax.random.normal(kx, (N, CIN, H, W), jnp.float32)
    weight, bias = _init_params(kparams, CIN, COUT)

    def conv_ref(xx, s):
        return lax.conv_general_dilated(
            xx, weight, window_strides=(s, s), padding="VALID",
            dimension_numbers=("NCHW", "OIHW", "NCHW"),
        ) + bias[None, :, None, None]

    ref1 = conv_ref(x, 1)
    ref2 = conv_ref(x, 2)

    # 1) exact-parity default (f32 MXU inputs, auto row tile)
    out = jax.block_until_ready(conv2x2_forward(x, weight, bias, stride=1))
    assert out.shape == (N, COUT, H - 1, W - 1), out.shape
    assert jnp.allclose(out, ref1, atol=1e-4, rtol=1e-4)

    # 2) forced multi row-tile: exercises the pl.Element halo-overlap path
    out_t = jax.block_until_ready(
        conv2x2_forward(x, weight, bias, stride=1, row_tile=8))
    assert jnp.allclose(out_t, ref1, atol=1e-4, rtol=1e-4)

    # 3) bf16 MXU inputs (recommended fast path on v5e/v6e/v7x), f32 accumulate
    out_bf = jax.block_until_ready(
        conv2x2_forward(x, weight, bias, stride=1, compute_dtype=jnp.bfloat16))
    assert jnp.allclose(out_bf, ref1, atol=5e-2, rtol=5e-2)

    # 4) stride=2 (space-to-depth -> single contiguous patch matmul)
    out_s2 = jax.block_until_ready(conv2x2_forward(x, weight, bias, stride=2))
    assert out_s2.shape == ref2.shape, (out_s2.shape, ref2.shape)
    assert jnp.allclose(out_s2, ref2, atol=1e-4, rtol=1e-4)

    # 5) NHWC end-to-end: no wrapper transposes in the hot path
    x_nhwc = jnp.transpose(x, (0, 2, 3, 1))
    out_nhwc = jax.block_until_ready(
        conv2x2_forward(x_nhwc, weight, bias, stride=2, data_format="NHWC"))
    assert jnp.allclose(jnp.transpose(out_nhwc, (0, 3, 1, 2)), ref2,
                        atol=1e-4, rtol=1e-4)

    print("KERNEL_OK")
</pallas_src>

<mosaic_0001>
module attributes {stable_mosaic.version = 11 : i64} {
  func.func @_conv2x2_s1_kernel(%arg0: i32, %arg1: i32, %arg2: memref<1x16x17x8xf32, #tpu.memory_space<vmem>>, %arg3: memref<4x8x128xf32, #tpu.memory_space<vmem>>, %arg4: memref<1x128xf32, #tpu.memory_space<vmem>>, %arg5: memref<1x15x16x128xf32, #tpu.memory_space<vmem>>) attributes {dimension_semantics = [#tpu.dimension_semantics<parallel>, #tpu.dimension_semantics<parallel>], iteration_bounds = array<i64: 2, 1>, scalar_prefetch = 0 : i64, scratch_operands = 0 : i64, tpu.core_type = #tpu.core_type<tc>, window_params = [{transform_indices = @transform_0, window_bounds = array<i64: 1, 16, 17, 8>}, {pipeline_mode = #tpu.pipeline_mode<synchronous>, transform_indices = @transform_1, window_bounds = array<i64: 4, 8, 128>}, {pipeline_mode = #tpu.pipeline_mode<synchronous>, transform_indices = @transform_2, window_bounds = array<i64: 1, 128>}, {transform_indices = @transform_3, window_bounds = array<i64: 1, 15, 16, 128>}]} {
    %c0 = arith.constant 0 : index
    %c0_0 = arith.constant 0 : index
    %c0_1 = arith.constant 0 : index
    %c0_2 = arith.constant 0 : index
    %0 = vector.load %arg2[%c0, %c0_0, %c0_1, %c0_2] : memref<1x16x17x8xf32, #tpu.memory_space<vmem>>, vector<1x15x16x8xf32>
    %1 = vector.shape_cast %0 : vector<1x15x16x8xf32> to vector<15x16x8xf32>
    %2 = vector.shape_cast %1 : vector<15x16x8xf32> to vector<240x8xf32>
    %c0_3 = arith.constant 0 : index
    %c0_4 = arith.constant 0 : index
    %c0_5 = arith.constant 0 : index
    %3 = vector.load %arg3[%c0_3, %c0_4, %c0_5] : memref<4x8x128xf32, #tpu.memory_space<vmem>>, vector<1x8x128xf32>
    %4 = vector.shape_cast %3 : vector<1x8x128xf32> to vector<8x128xf32>
    %cst = arith.constant dense<0.000000e+00> : vector<240x128xf32>
    %5 = tpu.matmul %2, %4, %cst {dimension_numbers = #tpu.dot_dimension_numbers<[1], [0], [0], [1], [0, 0, 1, 1], [], []>} : vector<240x8xf32>, vector<8x128xf32>, vector<240x128xf32> -> vector<240x128xf32>
    %c0_6 = arith.constant 0 : index
    %c0_7 = arith.constant 0 : index
    %c1 = arith.constant 1 : index
    %c0_8 = arith.constant 0 : index
    %6 = vector.load %arg2[%c0_6, %c0_7, %c1, %c0_8] : memref<1x16x17x8xf32, #tpu.memory_space<vmem>>, vector<1x15x16x8xf32>
    %7 = vector.shape_cast %6 : vector<1x15x16x8xf32> to vector<15x16x8xf32>
    %8 = vector.shape_cast %7 : vector<15x16x8xf32> to vector<240x8xf32>
    %c1_9 = arith.constant 1 : index
    %c0_10 = arith.constant 0 : index
    %c0_11 = arith.constant 0 : index
    %9 = vector.load %arg3[%c1_9, %c0_10, %c0_11] : memref<4x8x128xf32, #tpu.memory_space<vmem>>, vector<1x8x128xf32>
    %10 = vector.shape_cast %9 : vector<1x8x128xf32> to vector<8x128xf32>
    %cst_12 = arith.constant dense<0.000000e+00> : vector<240x128xf32>
    %11 = tpu.matmul %8, %10, %cst_12 {dimension_numbers = #tpu.dot_dimension_numbers<[1], [0], [0], [1], [0, 0, 1, 1], [], []>} : vector<240x8xf32>, vector<8x128xf32>, vector<240x128xf32> -> vector<240x128xf32>
    %12 = arith.addf %5, %11 : vector<240x128xf32>
    %c0_13 = arith.constant 0 : index
    %c1_14 = arith.constant 1 : index
    %c0_15 = arith.constant 0 : index
    %c0_16 = arith.constant 0 : index
    %13 = vector.load %arg2[%c0_13, %c1_14, %c0_15, %c0_16] : memref<1x16x17x8xf32, #tpu.memory_space<vmem>>, vector<1x15x16x8xf32>
    %14 = vector.shape_cast %13 : vector<1x15x16x8xf32> to vector<15x16x8xf32>
    %15 = vector.shape_cast %14 : vector<15x16x8xf32> to vector<240x8xf32>
    %c2 = arith.constant 2 : index
    %c0_17 = arith.constant 0 : index
    %c0_18 = arith.constant 0 : index
    %16 = vector.load %arg3[%c2, %c0_17, %c0_18] : memref<4x8x128xf32, #tpu.memory_space<vmem>>, vector<1x8x128xf32>
    %17 = vector.shape_cast %16 : vector<1x8x128xf32> to vector<8x128xf32>
    %cst_19 = arith.constant dense<0.000000e+00> : vector<240x128xf32>
    %18 = tpu.matmul %15, %17, %cst_19 {dimension_numbers = #tpu.dot_dimension_numbers<[1], [0], [0], [1], [0, 0, 1, 1], [], []>} : vector<240x8xf32>, vector<8x128xf32>, vector<240x128xf32> -> vector<240x128xf32>
    %19 = arith.addf %12, %18 : vector<240x128xf32>
    %c0_20 = arith.constant 0 : index
    %c1_21 = arith.constant 1 : index
    %c1_22 = arith.constant 1 : index
    %c0_23 = arith.constant 0 : index
    %20 = vector.load %arg2[%c0_20, %c1_21, %c1_22, %c0_23] : memref<1x16x17x8xf32, #tpu.memory_space<vmem>>, vector<1x15x16x8xf32>
    %21 = vector.shape_cast %20 : vector<1x15x16x8xf32> to vector<15x16x8xf32>
    %22 = vector.shape_cast %21 : vector<15x16x8xf32> to vector<240x8xf32>
    %c3 = arith.constant 3 : index
    %c0_24 = arith.constant 0 : index
    %c0_25 = arith.constant 0 : index
    %23 = vector.load %arg3[%c3, %c0_24, %c0_25] : memref<4x8x128xf32, #tpu.memory_space<vmem>>, vector<1x8x128xf32>
    %24 = vector.shape_cast %23 : vector<1x8x128xf32> to vector<8x128xf32>
    %cst_26 = arith.constant dense<0.000000e+00> : vector<240x128xf32>
    %25 = tpu.matmul %22, %24, %cst_26 {dimension_numbers = #tpu.dot_dimension_numbers<[1], [0], [0], [1], [0, 0, 1, 1], [], []>} : vector<240x8xf32>, vector<8x128xf32>, vector<240x128xf32> -> vector<240x128xf32>
    %26 = arith.addf %19, %25 : vector<240x128xf32>
    %c0_27 = arith.constant 0 : index
    %c0_28 = arith.constant 0 : index
    %27 = vector.load %arg4[%c0_27, %c0_28] : memref<1x128xf32, #tpu.memory_space<vmem>>, vector<1x128xf32>
    %28 = vector.broadcast %27 : vector<1x128xf32> to vector<240x128xf32>
    %29 = arith.addf %26, %28 : vector<240x128xf32>
    %30 = vector.shape_cast %29 : vector<240x128xf32> to vector<15x16x128xf32>
    %c0_29 = arith.constant 0 : index
    %c0_30 = arith.constant 0 : index
    %c0_31 = arith.constant 0 : index
    %c0_32 = arith.constant 0 : index
    %31 = vector.load %arg5[%c0_29, %c0_30, %c0_31, %c0_32] : memref<1x15x16x128xf32, #tpu.memory_space<vmem>>, vector<1x15x16x128xf32>
    %32 = vector.shape_cast %31 : vector<1x15x16x128xf32> to vector<15x16x128xf32>
    %33 = vector.shape_cast %30 : vector<15x16x128xf32> to vector<1x15x16x128xf32>
    tpu.vector_store %arg5[%c0_29, %c0_30, %c0_31, %c0_32], %33 {strides = array<i32>} : memref<1x15x16x128xf32, #tpu.memory_space<vmem>>, vector<1x15x16x128xf32>,
    return
  }
  func.func @transform_0(%arg0: i32, %arg1: i32) -> (i32, i32, i32, i32) {
    %c0_i32 = arith.constant 0 : i32
    %c0_i32_0 = arith.constant 0 : i32
    %c0_i32_1 = arith.constant 0 : i32
    %c0_i32_2 = arith.constant 0 : i32
    return %arg0, %c0_i32, %c0_i32_0, %c0_i32_1 : i32, i32, i32, i32
  }
  func.func @transform_1(%arg0: i32, %arg1: i32) -> (i32, i32, i32) {
    %c0_i32 = arith.constant 0 : i32
    %c0_i32_0 = arith.constant 0 : i32
    %c0_i32_1 = arith.constant 0 : i32
    %c0_i32_2 = arith.constant 0 : i32
    return %c0_i32, %c0_i32_0, %c0_i32_1 : i32, i32, i32
  }
  func.func @transform_2(%arg0: i32, %arg1: i32) -> (i32, i32) {
    %c0_i32 = arith.constant 0 : i32
    %c0_i32_0 = arith.constant 0 : i32
    %c0_i32_1 = arith.constant 0 : i32
    return %c0_i32, %c0_i32_0 : i32, i32
  }
  func.func @transform_3(%arg0: i32, %arg1: i32) -> (i32, i32, i32, i32) {
    %c0_i32 = arith.constant 0 : i32
    %c0_i32_0 = arith.constant 0 : i32
    %c0_i32_1 = arith.constant 0 : i32
    return %arg0, %arg1, %c0_i32, %c0_i32_0 : i32, i32, i32, i32
  }
}

</mosaic_0001>

<llo_original>
// kernel: tpu_custom_call.1
$region0: #{tpu_custom_call.1}
  #allocation0 [shape = 'u32[]', space=smem, size = 0x4, offset = 0x4, fixed_abs, tag = 'smem constant byte address 0x4 - core index']
  #allocation1 [shape = 'u32[72,128]{1,0:T(1,128)}', space=vmem, size = 0x9000, scoped, tag = 'internal scratch']
  %s0 = inlined_call_operand.vmem [shape: f32[2,16,17,8], index: 0, kind: input, shape index: {}]
  %s1 = inlined_call_operand.vmem [shape: f32[4,8,128], index: 1, kind: input, shape index: {}]
  %s2 = inlined_call_operand.vmem [shape: f32[1,128], index: 2, kind: input, shape index: {}]
  %s3 = inlined_call_operand.hbm [shape: f32[2,15,16,128], index: 3, kind: output, shape index: {}]
  %s4 = sld [smem:[#allocation0]]
  $region45: #{tpu_custom_call.1} parent=0
    _
  %s6 = ssub.s32 1, %s4
  %s7 = scalar_select 0, %s6, %s4
  $region1: #{tpu_custom_call.1} parent=0
    #allocation2 [shape = 'u8[245760]{0}', space=vmem, size = 0x3c000, scoped, tag = 'output window, operand 0']
    #allocation3 [shape = 's32[2]{0}', space=sflag, size = 0x8, scoped, tag = 'scoped memory for tpu_custom_call.1']
    %8 = vsyncpa [#allocation3], 0
    %s9 = scalar_lea.sflag [#allocation3], 1
    %10 = vsyncpa %s9, 0
    loop: start=0, step=1, limit=4
    $region2: #{tpu_custom_call.1} parent=1 // loop_pre_header
      _
    $region3: #{tpu_custom_call.1} parent=1 // loop_header
      %s12 = sphi 0, %s16
      %p13 = scmp.ge.s32.totalorder %s12, 4
      %s19 = sphi 0, %s31
      %s20 = sphi 0, %s27
      %s21 = sphi 0, %s19
      %s22 = sphi 0, %s20
      %s23 = sphi 0, %s21
      %s24 = sphi 0, %s22
      %s34 = sphi 0, %s36
      %s37 = sphi 0, %s34
      %s38 = sphi 0, %s37
      %s54 = sphi 0, %s38
      %s58 = sphi 0, %s58
      %s60 = sphi 0, %s58
      %s61 = sphi 0, %s60
      %s75 = sphi 0, %s61
      %s79 = sphi 0, %s79
      %s81 = sphi 0, %s79
      %s82 = sphi 0, %s81
      %s96 = sphi 0, %s82
      %s104 = sphi 0, %s106
      %s107 = sphi 0, %s104
      %s108 = sphi 0, %s107
      %s124 = sphi 0, %s108
    $region4: #{tpu_custom_call.1} parent=1 // loop_header_branch
      %15 = sbr.rel (%p13) target = $region8
    $region5: #{tpu_custom_call.1} parent=1 // loop_body
      %s17 = ssub.s32 %s12, 1
      %s18 = ssub.s32 %s12, 2
      %s25 = sadd.s32 1, %s20
      %p26 = scmp.ge.s32.totalorder %s25, 1
      %s27 = scalar_select %p26, 0, %s25
      %s28 = sadd.s32 1, %s19
      %s29 = scalar_select %p26, %s28, %s19
      %p30 = scmp.ge.s32.totalorder %s29, 2
      %s31 = scalar_select %p30, 0, %s29
      %s32 = ssub.s32 %s19, %s31
      %p33 = scmp.eq.s32.totalorder %s32, 0
      %s35 = sadd.s32 %s34, 1
      %s36 = scalar_select %p33, %s34, %s35
      %p39 = pneg %p33
      %p40 = scmp.eq.s32.totalorder %s12, 1
      %p41 = por %p39, %p40
      %p42 = scmp.ne.s32.totalorder %s34, %s37
      %p43 = scmp.eq.s32.totalorder %s12, 0
      %p44 = por %p42, %p43
      %p45 = scmp.ne.s32.totalorder %s34, %s37
      %p46 = scmp.eq.s32.totalorder %s17, 1
      %p47 = por %p45, %p46
      %p48 = scmp.ne.s32.totalorder %s37, %s38
      %p49 = scmp.eq.s32.totalorder %s17, 0
      %p50 = por %p48, %p49
      %p51 = scmp.ne.s32.totalorder %s37, %s38
      %p52 = scmp.eq.s32.totalorder %s18, 1
      %p53 = por %p51, %p52
      %p55 = scmp.ne.s32.totalorder %s38, %s54
      %p56 = scmp.eq.s32.totalorder %s18, 0
      %p57 = por %p55, %p56
      %s59 = sadd.s32 %s58, 1
      %p62 = scmp.eq.s32.totalorder %s12, 1
      %p63 = scmp.ne.s32.totalorder %s58, %s60
      %p64 = scmp.eq.s32.totalorder %s12, 0
      %p65 = por %p63, %p64
      %p66 = scmp.ne.s32.totalorder %s58, %s60
      %p67 = scmp.eq.s32.totalorder %s17, 1
      %p68 = por %p66, %p67
      %p69 = scmp.ne.s32.totalorder %s60, %s61
      %p70 = scmp.eq.s32.totalorder %s17, 0
      %p71 = por %p69, %p70
      %p72 = scmp.ne.s32.totalorder %s60, %s61
      %p73 = scmp.eq.s32.totalorder %s18, 1
      %p74 = por %p72, %p73
      %p76 = scmp.ne.s32.totalorder %s61, %s75
      %p77 = scmp.eq.s32.totalorder %s18, 0
      %p78 = por %p76, %p77
      %s80 = sadd.s32 %s79, 1
      %p83 = scmp.eq.s32.totalorder %s12, 1
      %p84 = scmp.ne.s32.totalorder %s79, %s81
      %p85 = scmp.eq.s32.totalorder %s12, 0
      %p86 = por %p84, %p85
      %p87 = scmp.ne.s32.totalorder %s79, %s81
      %p88 = scmp.eq.s32.totalorder %s17, 1
      %p89 = por %p87, %p88
      %p90 = scmp.ne.s32.totalorder %s81, %s82
      %p91 = scmp.eq.s32.totalorder %s17, 0
      %p92 = por %p90, %p91
      %p93 = scmp.ne.s32.totalorder %s81, %s82
      %p94 = scmp.eq.s32.totalorder %s18, 1
      %p95 = por %p93, %p94
      %p97 = scmp.ne.s32.totalorder %s82, %s96
      %p98 = scmp.eq.s32.totalorder %s18, 0
      %p99 = por %p97, %p98
      %s100 = ssub.s32 %s19, %s31
      %s101 = ssub.s32 %s20, %s27
      %s102 = sor.u32 %s100, %s101
      %p103 = scmp.eq.s32.totalorder %s102, 0
      %s105 = sadd.s32 %s104, 1
      %s106 = scalar_select %p103, %s104, %s105
      %p109 = pneg %p103
      %p110 = scmp.eq.s32.totalorder %s12, 1
      %p111 = por %p109, %p110
      %p112 = scmp.ne.s32.totalorder %s104, %s107
      %p113 = scmp.eq.s32.totalorder %s12, 0
      %p114 = por %p112, %p113
      %p115 = scmp.ne.s32.totalorder %s104, %s107
      %p116 = scmp.eq.s32.totalorder %s17, 1
      %p117 = por %p115, %p116
      %p118 = scmp.ne.s32.totalorder %s107, %s108
      %p119 = scmp.eq.s32.totalorder %s17, 0
      %p120 = por %p118, %p119
      %p121 = scmp.ne.s32.totalorder %s107, %s108
      %p122 = scmp.eq.s32.totalorder %s18, 1
      %p123 = por %p121, %p122
      %p125 = scmp.ne.s32.totalorder %s108, %s124
      %p126 = scmp.eq.s32.totalorder %s18, 0
      %p127 = por %p125, %p126
      %p128 = scmp.le.s32.totalorder 1, %s12
      %p129 = scmp.lt.s32.totalorder %s12, 3
      %p130 = pnand %p128, %p129
      %p131 = pneg %p130
      // Predicated region
      $region9: #{tpu_custom_call.1} parent=5 // pred_check
        _
      $region10: #{tpu_custom_call.1} parent=5 // pred_check_branch
        %133 = sbr.rel (%p130) target = $region12
      $region11: #{tpu_custom_call.1} parent=5 // pred_region
        %s134 = ssub.s32 %s12, 1
        // Predicated region
        $region13: #{tpu_custom_call.1} parent=11 // pred_check
          %p135 = pneg %p71
        $region14: #{tpu_custom_call.1} parent=11 // pred_check_branch
          %137 = sbr.rel (%p135) target = $region16
        $region15: #{tpu_custom_call.1} parent=11 // pred_region
          _
        $region16: #{tpu_custom_call.1} parent=11 // pred_fallthru
          _
        // Predicated region
        $region17: #{tpu_custom_call.1} parent=11 // pred_check
          %p138 = pneg %p92
        $region18: #{tpu_custom_call.1} parent=11 // pred_check_branch
          %140 = sbr.rel (%p138) target = $region20
        $region19: #{tpu_custom_call.1} parent=11 // pred_region
          _
        $region20: #{tpu_custom_call.1} parent=11 // pred_fallthru
          _
      $region12: #{tpu_custom_call.1} parent=5 // pred_fallthru
        _
      %p141 = scmp.lt.s32.totalorder %s12, 2
      // Predicated region
      $region21: #{tpu_custom_call.1} parent=5 // pred_check
        %p142 = pneg %p141
      $region22: #{tpu_custom_call.1} parent=5 // pred_check_branch
        %144 = sbr.rel (%p142) target = $region24
      $region23: #{tpu_custom_call.1} parent=5 // pred_region
        // Predicated region
        $region25: #{tpu_custom_call.1} parent=23 // pred_check
          %p145 = pneg %p44
        $region26: #{tpu_custom_call.1} parent=23 // pred_check_branch
          %147 = sbr.rel (%p145) target = $region28
        $region27: #{tpu_custom_call.1} parent=23 // pred_region
          %p148 = scmp.lt.s32.totalorder %s19, 1
          %s149 = scalar_select %p148, %s19, 1
          %s150 = smul.addr %s149, 48
          %s151 = smul.addr %s150, 8
          %s152 = scalar_lea.vmem %s0, %s151
        $region28: #{tpu_custom_call.1} parent=23 // pred_fallthru
          _
      $region24: #{tpu_custom_call.1} parent=5 // pred_fallthru
        _
      %p153 = scmp.le.s32.totalorder 1, %s12
      %p154 = scmp.lt.s32.totalorder %s12, 3
      %p155 = pnand %p153, %p154
      %p156 = pneg %p155
      // Predicated region
      $region29: #{tpu_custom_call.1} parent=5 // pred_check
        _
      $region30: #{tpu_custom_call.1} parent=5 // pred_check_branch
        %158 = sbr.rel (%p155) target = $region32
      $region31: #{tpu_custom_call.1} parent=5 // pred_region
        %s159 = ssub.s32 %s12, 1
        %p160 = scmp.lt.s32.totalorder %s21, 1
        %s161 = scalar_select %p160, %s21, 1
        %s162 = smul.addr %s161, 48
        %s163 = smul.addr %s162, 8
        %s164 = scalar_lea.vmem %s0, %s163
        %p165 = pneg %p50
        %p166 = pneg %p47
        %p167 = pneg %p71
        %p168 = pneg %p68
        %p169 = pneg %p92
        %p170 = pneg %p89
        %p171 = pneg %p120
        %p172 = pneg %p117
        %s173 = sand.u32 %s107, 1
        %s174 = scalar_lea.sflag [#allocation3], %s173
        %s175 = sand.u32 %s107, 1
        %s176 = smul.addr %s175, 240
        %s177 = scalar_lea.vmem [#allocation2], %s176
        %p178 = scmp.lt.s32.totalorder %s21, 1
        %s179 = scalar_select %p178, %s21, 1
        %s180 = smul.addr %s179, 48
        %s181 = smul.addr %s180, 8
        %s182 = scalar_lea.vmem %s0, %s181
        %s183 = smul.u32 15, %s22
        %v184 = vld [vmem:[%s182] sm:$0xff]
        %v185 = vld [vmem:[%s182 + $0x8] sm:$0xff]
        %v186 = vld [vmem:[%s182 + $0x18] sm:$0xff]
        %v187 = vld [vmem:[%s182 + $0x20] sm:$0xff]
        %v188 = vld [vmem:[%s182 + $0x30] sm:$0xff]
        %v189 = vld [vmem:[%s182 + $0x38] sm:$0xff]
        %v190 = vld [vmem:[%s182 + $0x48] sm:$0xff]
        %v191 = vld [vmem:[%s182 + $0x50] sm:$0xff]
        %v192 = vld [vmem:[%s182 + $0x60] sm:$0xff]
        %v193 = vld [vmem:[%s182 + $0x68] sm:$0xff]
        %v194 = vld [vmem:[%s182 + $0x78] sm:$0xff]
        %v195 = vld [vmem:[%s182 + $0x80] sm:$0xff]
        %v196 = vld [vmem:[%s182 + $0x90] sm:$0xff]
        %v197 = vld [vmem:[%s182 + $0x98] sm:$0xff]
        %v198 = vld [vmem:[%s182 + $0xa8] sm:$0xff]
        %v199 = vld [vmem:[%s182 + $0xb0] sm:$0xff]
        %v200 = vld [vmem:[%s182 + $0xc0] sm:$0xff]
        %v201 = vld [vmem:[%s182 + $0xc8] sm:$0xff]
        %v202 = vld [vmem:[%s182 + $0xd8] sm:$0xff]
        %v203 = vld [vmem:[%s182 + $0xe0] sm:$0xff]
        %v204 = vld [vmem:[%s182 + $0xf0] sm:$0xff]
        %v205 = vld [vmem:[%s182 + $0xf8] sm:$0xff]
        %v206 = vld [vmem:[%s182 + $0x108] sm:$0xff]
        %v207 = vld [vmem:[%s182 + $0x110] sm:$0xff]
        %v208 = vld [vmem:[%s182 + $0x120] sm:$0xff]
        %v209 = vld [vmem:[%s182 + $0x128] sm:$0xff]
        %v210 = vld [vmem:[%s182 + $0x138] sm:$0xff]
        %v211 = vld [vmem:[%s182 + $0x140] sm:$0xff]
        %v212 = vld [vmem:[%s182 + $0x150] sm:$0xff]
        %v213 = vld [vmem:[%s182 + $0x158] sm:$0xff]
        %v214 = vld [vmem:[%s1] sm:$0xff]
        %v215 = vld [vmem:[%s182 + $0x1] sm:$0xff]
        %v216 = vld [vmem:[%s182 + $0x9] sm:$0xff]
        %v217 = vld [vmem:[%s182 + $0x19] sm:$0xff]
        %v218 = vld [vmem:[%s182 + $0x21] sm:$0xff]
        %v219 = vld [vmem:[%s182 + $0x31] sm:$0xff]
        %v220 = vld [vmem:[%s182 + $0x39] sm:$0xff]
        %v221 = vld [vmem:[%s182 + $0x49] sm:$0xff]
        %v222 = vld [vmem:[%s182 + $0x51] sm:$0xff]
        %v223 = vld [vmem:[%s182 + $0x61] sm:$0xff]
        %v224 = vld [vmem:[%s182 + $0x69] sm:$0xff]
        %v225 = vld [vmem:[%s182 + $0x79] sm:$0xff]
        %v226 = vld [vmem:[%s182 + $0x81] sm:$0xff]
        %v227 = vld [vmem:[%s182 + $0x91] sm:$0xff]
        %v228 = vld [vmem:[%s182 + $0x99] sm:$0xff]
        %v229 = vld [vmem:[%s182 + $0xa9] sm:$0xff]
        %v230 = vld [vmem:[%s182 + $0xb1] sm:$0xff]
        %v231 = vld [vmem:[%s182 + $0xc1] sm:$0xff]
        %v232 = vld [vmem:[%s182 + $0xc9] sm:$0xff]
        %v233 = vld [vmem:[%s182 + $0xd9] sm:$0xff]
        %v234 = vld [vmem:[%s182 + $0xe1] sm:$0xff]
        %v235 = vld [vmem:[%s182 + $0xf1] sm:$0xff]
        %v236 = vld [vmem:[%s182 + $0xf9] sm:$0xff]
        %v237 = vld [vmem:[%s182 + $0x109] sm:$0xff]
        %v238 = vld [vmem:[%s182 + $0x111] sm:$0xff]
        %v239 = vld [vmem:[%s182 + $0x121] sm:$0xff]
        %v240 = vld [vmem:[%s182 + $0x129] sm:$0xff]
        %v241 = vld [vmem:[%s182 + $0x139] sm:$0xff]
        %v242 = vld [vmem:[%s182 + $0x141] sm:$0xff]
        %v243 = vld [vmem:[%s182 + $0x151] sm:$0xff]
        %v244 = vld [vmem:[%s182 + $0x159] sm:$0xff]
        %s245 = scalar_lea.vmem %s1, 8
        %v246 = vld [vmem:[%s245] sm:$0xff]
        %vm247 = vcmask 64512
        %v249 = vsel %vm247, %v215, 0
        %v252 = vsel %vm247, %v216, 0
        %v255 = vsel %vm247, %v217, 0
        %v258 = vsel %vm247, %v218, 0
        %v261 = vsel %vm247, %v219, 0
        %v264 = vsel %vm247, %v220, 0
        %v267 = vsel %vm247, %v221, 0
        %v270 = vsel %vm247, %v222, 0
        %v273 = vsel %vm247, %v223, 0
        %v276 = vsel %vm247, %v224, 0
        %v279 = vsel %vm247, %v225, 0
        %v282 = vsel %vm247, %v226, 0
        %v285 = vsel %vm247, %v227, 0
        %v288 = vsel %vm247, %v228, 0
        %v291 = vsel %vm247, %v229, 0
        %v294 = vsel %vm247, %v230, 0
        %v297 = vsel %vm247, %v231, 0
        %v300 = vsel %vm247, %v232, 0
        %v303 = vsel %vm247, %v233, 0
        %v306 = vsel %vm247, %v234, 0
        %v309 = vsel %vm247, %v235, 0
        %v312 = vsel %vm247, %v236, 0
        %v315 = vsel %vm247, %v237, 0
        %v318 = vsel %vm247, %v238, 0
        %v321 = vsel %vm247, %v239, 0
        %v324 = vsel %vm247, %v240, 0
        %v327 = vsel %vm247, %v241, 0
        %v330 = vsel %vm247, %v242, 0
        %v333 = vsel %vm247, %v243, 0
        %v336 = vsel %vm247, %v244, 0
        %338 = vmatpush.msra.mxu0 0.0
        %339 = vmatpush.msra.mxu0 0.0
        %340 = vmatpush.msra.mxu0 0.0
        %341 = vmatpush.msra.mxu0 0.0
        %342 = vmatpush.msra.mxu0 0.0
        %343 = vmatpush.msra.mxu0 0.0
        %344 = vmatpush.msra.mxu0 0.0
        %345 = vmatpush.msra.mxu0 0.0
        %346 = vmatpush.msra.mxu0 0.0
        %347 = vmatpush.msra.mxu0 0.0
        %348 = vmatpush.msra.mxu0 0.0
        %349 = vmatpush.msra.mxu0 0.0
        %350 = vmatpush.msra.mxu0 0.0
        %351 = vmatpush.msra.mxu0 0.0
        %352 = vmatpush.msra.mxu0 0.0
        %353 = vmatpush.msra.mxu0 %v246
        %354 = vmatmul.f32.gmra.mxu0 %v249
        %v355 = vpop.f32.mrf.mxu0
        %v356 = vadd.f32 0.0, %v355
        %357 = vmatmul.f32.gmra.mxu0 %v252
        %v358 = vpop.f32.mrf.mxu0
        %v359 = vadd.f32 0.0, %v358
        %360 = vmatmul.f32.gmra.mxu0 %v255
        %v361 = vpop.f32.mrf.mxu0
        %v362 = vadd.f32 0.0, %v361
        %363 = vmatmul.f32.gmra.mxu0 %v258
        %v364 = vpop.f32.mrf.mxu0
        %v365 = vadd.f32 0.0, %v364
        %366 = vmatmul.f32.gmra.mxu0 %v261
        %v367 = vpop.f32.mrf.mxu0
        %v368 = vadd.f32 0.0, %v367
        %369 = vmatmul.f32.gmra.mxu0 %v264
        %v370 = vpop.f32.mrf.mxu0
        %v371 = vadd.f32 0.0, %v370
        %372 = vmatmul.f32.gmra.mxu0 %v267
        %v373 = vpop.f32.mrf.mxu0
        %v374 = vadd.f32 0.0, %v373
        %375 = vmatmul.f32.gmra.mxu0 %v270
        %v376 = vpop.f32.mrf.mxu0
        %v377 = vadd.f32 0.0, %v376
        %378 = vmatmul.f32.gmra.mxu0 %v273
        %v379 = vpop.f32.mrf.mxu0
        %v380 = vadd.f32 0.0, %v379
        %381 = vmatmul.f32.gmra.mxu0 %v276
        %v382 = vpop.f32.mrf.mxu0
        %v383 = vadd.f32 0.0, %v382
        %384 = vmatmul.f32.gmra.mxu0 %v279
        %v385 = vpop.f32.mrf.mxu0
        %v386 = vadd.f32 0.0, %v385
        %387 = vmatmul.f32.gmra.mxu0 %v282
        %v388 = vpop.f32.mrf.mxu0
        %v389 = vadd.f32 0.0, %v388
        %390 = vmatmul.f32.gmra.mxu0 %v285
        %v391 = vpop.f32.mrf.mxu0
        %v392 = vadd.f32 0.0, %v391
        %393 = vmatmul.f32.gmra.mxu0 %v288
        %v394 = vpop.f32.mrf.mxu0
        %v395 = vadd.f32 0.0, %v394
        %396 = vmatmul.f32.gmra.mxu0 %v291
        %v397 = vpop.f32.mrf.mxu0
        %v398 = vadd.f32 0.0, %v397
        %399 = vmatmul.f32.gmra.mxu0 %v294
        %v400 = vpop.f32.mrf.mxu0
        %v401 = vadd.f32 0.0, %v400
        %402 = vmatmul.f32.gmra.mxu0 %v297
        %v403 = vpop.f32.mrf.mxu0
        %v404 = vadd.f32 0.0, %v403
        %405 = vmatmul.f32.gmra.mxu0 %v300
        %v406 = vpop.f32.mrf.mxu0
        %v407 = vadd.f32 0.0, %v406
        %408 = vmatmul.f32.gmra.mxu0 %v303
        %v409 = vpop.f32.mrf.mxu0
        %v410 = vadd.f32 0.0, %v409
        %411 = vmatmul.f32.gmra.mxu0 %v306
        %v412 = vpop.f32.mrf.mxu0
        %v413 = vadd.f32 0.0, %v412
        %414 = vmatmul.f32.gmra.mxu0 %v309
        %v415 = vpop.f32.mrf.mxu0
        %v416 = vadd.f32 0.0, %v415
        %417 = vmatmul.f32.gmra.mxu0 %v312
        %v418 = vpop.f32.mrf.mxu0
        %v419 = vadd.f32 0.0, %v418
        %420 = vmatmul.f32.gmra.mxu0 %v315
        %v421 = vpop.f32.mrf.mxu0
        %v422 = vadd.f32 0.0, %v421
        %423 = vmatmul.f32.gmra.mxu0 %v318
        %v424 = vpop.f32.mrf.mxu0
        %v425 = vadd.f32 0.0, %v424
        %426 = vmatmul.f32.gmra.mxu0 %v321
        %v427 = vpop.f32.mrf.mxu0
        %v428 = vadd.f32 0.0, %v427
        %429 = vmatmul.f32.gmra.mxu0 %v324
        %v430 = vpop.f32.mrf.mxu0
        %v431 = vadd.f32 0.0, %v430
        %432 = vmatmul.f32.gmra.mxu0 %v327
        %v433 = vpop.f32.mrf.mxu0
        %v434 = vadd.f32 0.0, %v433
        %435 = vmatmul.f32.gmra.mxu0 %v330
        %v436 = vpop.f32.mrf.mxu0
        %v437 = vadd.f32 0.0, %v436
        %438 = vmatmul.f32.gmra.mxu0 %v333
        %v439 = vpop.f32.mrf.mxu0
        %v440 = vadd.f32 0.0, %v439
        %441 = vmatmul.f32.gmra.mxu0 %v336
        %v442 = vpop.f32.mrf.mxu0
        %v443 = vadd.f32 0.0, %v442
        %444 = vdwg.mxu0
        %v446 = vsel %vm247, %v184, 0
        %v449 = vsel %vm247, %v185, 0
        %v452 = vsel %vm247, %v186, 0
        %v455 = vsel %vm247, %v187, 0
        %v458 = vsel %vm247, %v188, 0
        %v461 = vsel %vm247, %v189, 0
        %v464 = vsel %vm247, %v190, 0
        %v467 = vsel %vm247, %v191, 0
        %v470 = vsel %vm247, %v192, 0
        %v473 = vsel %vm247, %v193, 0
        %v476 = vsel %vm247, %v194, 0
        %v479 = vsel %vm247, %v195, 0
        %v482 = vsel %vm247, %v196, 0
        %v485 = vsel %vm247, %v197, 0
        %v488 = vsel %vm247, %v198, 0
        %v491 = vsel %vm247, %v199, 0
        %v494 = vsel %vm247, %v200, 0
        %v497 = vsel %vm247, %v201, 0
        %v500 = vsel %vm247, %v202, 0
        %v503 = vsel %vm247, %v203, 0
        %v506 = vsel %vm247, %v204, 0
        %v509 = vsel %vm247, %v205, 0
        %v512 = vsel %vm247, %v206, 0
        %v515 = vsel %vm247, %v207, 0
        %v518 = vsel %vm247, %v208, 0
        %v521 = vsel %vm247, %v209, 0
        %v524 = vsel %vm247, %v210, 0
        %v527 = vsel %vm247, %v211, 0
        %v530 = vsel %vm247, %v212, 0
        %v533 = vsel %vm247, %v213, 0
        %535 = vmatpush.msra.mxu0 0.0
        %536 = vmatpush.msra.mxu0 0.0
        %537 = vmatpush.msra.mxu0 0.0
        %538 = vmatpush.msra.mxu0 0.0
        %539 = vmatpush.msra.mxu0 0.0
        %540 = vmatpush.msra.mxu0 0.0
        %541 = vmatpush.msra.mxu0 0.0
        %542 = vmatpush.msra.mxu0 0.0
        %543 = vmatpush.msra.mxu0 0.0
        %544 = vmatpush.msra.mxu0 0.0
        %545 = vmatpush.msra.mxu0 0.0
        %546 = vmatpush.msra.mxu0 0.0
        %547 = vmatpush.msra.mxu0 0.0
        %548 = vmatpush.msra.mxu0 0.0
        %549 = vmatpush.msra.mxu0 0.0
        %550 = vmatpush.msra.mxu0 %v214
        %551 = vmatmul.f32.gmra.mxu0 %v446
        %v552 = vpop.f32.mrf.mxu0
        %v553 = vadd.f32 %v356, %v552
        %554 = vmatmul.f32.gmra.mxu0 %v449
        %v555 = vpop.f32.mrf.mxu0
        %v556 = vadd.f32 %v359, %v555
        %557 = vmatmul.f32.gmra.mxu0 %v452
        %v558 = vpop.f32.mrf.mxu0
        %v559 = vadd.f32 %v362, %v558
        %560 = vmatmul.f32.gmra.mxu0 %v455
        %v561 = vpop.f32.mrf.mxu0
        %v562 = vadd.f32 %v365, %v561
        %563 = vmatmul.f32.gmra.mxu0 %v458
        %v564 = vpop.f32.mrf.mxu0
        %v565 = vadd.f32 %v368, %v564
        %566 = vmatmul.f32.gmra.mxu0 %v461
        %v567 = vpop.f32.mrf.mxu0
        %v568 = vadd.f32 %v371, %v567
        %569 = vmatmul.f32.gmra.mxu0 %v464
        %v570 = vpop.f32.mrf.mxu0
        %v571 = vadd.f32 %v374, %v570
        %572 = vmatmul.f32.gmra.mxu0 %v467
        %v573 = vpop.f32.mrf.mxu0
        %v574 = vadd.f32 %v377, %v573
        %575 = vmatmul.f32.gmra.mxu0 %v470
        %v576 = vpop.f32.mrf.mxu0
        %v577 = vadd.f32 %v380, %v576
        %578 = vmatmul.f32.gmra.mxu0 %v473
        %v579 = vpop.f32.mrf.mxu0
        %v580 = vadd.f32 %v383, %v579
        %581 = vmatmul.f32.gmra.mxu0 %v476
        %v582 = vpop.f32.mrf.mxu0
        %v583 = vadd.f32 %v386, %v582
        %584 = vmatmul.f32.gmra.mxu0 %v479
        %v585 = vpop.f32.mrf.mxu0
        %v586 = vadd.f32 %v389, %v585
        %587 = vmatmul.f32.gmra.mxu0 %v482
        %v588 = vpop.f32.mrf.mxu0
        %v589 = vadd.f32 %v392, %v588
        %590 = vmatmul.f32.gmra.mxu0 %v485
        %v591 = vpop.f32.mrf.mxu0
        %v592 = vadd.f32 %v395, %v591
        %593 = vmatmul.f32.gmra.mxu0 %v488
        %v594 = vpop.f32.mrf.mxu0
        %v595 = vadd.f32 %v398, %v594
        %596 = vmatmul.f32.gmra.mxu0 %v491
        %v597 = vpop.f32.mrf.mxu0
        %v598 = vadd.f32 %v401, %v597
        %599 = vmatmul.f32.gmra.mxu0 %v494
        %v600 = vpop.f32.mrf.mxu0
        %v601 = vadd.f32 %v404, %v600
        %602 = vmatmul.f32.gmra.mxu0 %v497
        %v603 = vpop.f32.mrf.mxu0
        %v604 = vadd.f32 %v407, %v603
        %605 = vmatmul.f32.gmra.mxu0 %v500
        %v606 = vpop.f32.mrf.mxu0
        %v607 = vadd.f32 %v410, %v606
        %608 = vmatmul.f32.gmra.mxu0 %v503
        %v609 = vpop.f32.mrf.mxu0
        %v610 = vadd.f32 %v413, %v609
        %611 = vmatmul.f32.gmra.mxu0 %v506
        %v612 = vpop.f32.mrf.mxu0
        %v613 = vadd.f32 %v416, %v612
        %614 = vmatmul.f32.gmra.mxu0 %v509
        %v615 = vpop.f32.mrf.mxu0
        %v616 = vadd.f32 %v419, %v615
        %617 = vmatmul.f32.gmra.mxu0 %v512
        %v618 = vpop.f32.mrf.mxu0
        %v619 = vadd.f32 %v422, %v618
        %620 = vmatmul.f32.gmra.mxu0 %v515
        %v621 = vpop.f32.mrf.mxu0
        %v622 = vadd.f32 %v425, %v621
        %623 = vmatmul.f32.gmra.mxu0 %v518
        %v624 = vpop.f32.mrf.mxu0
        %v625 = vadd.f32 %v428, %v624
        %626 = vmatmul.f32.gmra.mxu0 %v521
        %v627 = vpop.f32.mrf.mxu0
        %v628 = vadd.f32 %v431, %v627
        %629 = vmatmul.f32.gmra.mxu0 %v524
        %v630 = vpop.f32.mrf.mxu0
        %v631 = vadd.f32 %v434, %v630
        %632 = vmatmul.f32.gmra.mxu0 %v527
        %v633 = vpop.f32.mrf.mxu0
        %v634 = vadd.f32 %v437, %v633
        %635 = vmatmul.f32.gmra.mxu0 %v530
        %v636 = vpop.f32.mrf.mxu0
        %v637 = vadd.f32 %v440, %v636
        %638 = vmatmul.f32.gmra.mxu0 %v533
        %v639 = vpop.f32.mrf.mxu0
        %v640 = vadd.f32 %v443, %v639
        %641 = vdwg.mxu0
        %s642 = scalar_lea.vmem %s182, 24
        %v643 = vld [vmem:[%s642] sm:$0xff]
        %v644 = vld [vmem:[%s642 + $0x8] sm:$0xff]
        %v645 = vld [vmem:[%s642 + $0x18] sm:$0xff]
        %v646 = vld [vmem:[%s642 + $0x20] sm:$0xff]
        %v647 = vld [vmem:[%s642 + $0x30] sm:$0xff]
        %v648 = vld [vmem:[%s642 + $0x38] sm:$0xff]
        %v649 = vld [vmem:[%s642 + $0x48] sm:$0xff]
        %v650 = vld [vmem:[%s642 + $0x50] sm:$0xff]
        %v651 = vld [vmem:[%s642 + $0x60] sm:$0xff]
        %v652 = vld [vmem:[%s642 + $0x68] sm:$0xff]
        %v653 = vld [vmem:[%s642 + $0x78] sm:$0xff]
        %v654 = vld [vmem:[%s642 + $0x80] sm:$0xff]
        %v655 = vld [vmem:[%s642 + $0x90] sm:$0xff]
        %v656 = vld [vmem:[%s642 + $0x98] sm:$0xff]
        %v657 = vld [vmem:[%s642 + $0xa8] sm:$0xff]
        %v658 = vld [vmem:[%s642 + $0xb0] sm:$0xff]
        %v659 = vld [vmem:[%s642 + $0xc0] sm:$0xff]
        %v660 = vld [vmem:[%s642 + $0xc8] sm:$0xff]
        %v661 = vld [vmem:[%s642 + $0xd8] sm:$0xff]
        %v662 = vld [vmem:[%s642 + $0xe0] sm:$0xff]
        %v663 = vld [vmem:[%s642 + $0xf0] sm:$0xff]
        %v664 = vld [vmem:[%s642 + $0xf8] sm:$0xff]
        %v665 = vld [vmem:[%s642 + $0x108] sm:$0xff]
        %v666 = vld [vmem:[%s642 + $0x110] sm:$0xff]
        %v667 = vld [vmem:[%s642 + $0x120] sm:$0xff]
        %v668 = vld [vmem:[%s642 + $0x128] sm:$0xff]
        %v669 = vld [vmem:[%s642 + $0x138] sm:$0xff]
        %v670 = vld [vmem:[%s642 + $0x140] sm:$0xff]
        %v671 = vld [vmem:[%s642 + $0x150] sm:$0xff]
        %v672 = vld [vmem:[%s642 + $0x158] sm:$0xff]
        %s673 = scalar_lea.vmem %s1, 16
        %v674 = vld [vmem:[%s673] sm:$0xff]
        %v676 = vsel %vm247, %v643, 0
        %v679 = vsel %vm247, %v644, 0
        %v682 = vsel %vm247, %v645, 0
        %v685 = vsel %vm247, %v646, 0
        %v688 = vsel %vm247, %v647, 0
        %v691 = vsel %vm247, %v648, 0
        %v694 = vsel %vm247, %v649, 0
        %v697 = vsel %vm247, %v650, 0
        %v700 = vsel %vm247, %v651, 0
        %v703 = vsel %vm247, %v652, 0
        %v706 = vsel %vm247, %v653, 0
        %v709 = vsel %vm247, %v654, 0
        %v712 = vsel %vm247, %v655, 0
        %v715 = vsel %vm247, %v656, 0
        %v718 = vsel %vm247, %v657, 0
        %v721 = vsel %vm247, %v658, 0
        %v724 = vsel %vm247, %v659, 0
        %v727 = vsel %vm247, %v660, 0
        %v730 = vsel %vm247, %v661, 0
        %v733 = vsel %vm247, %v662, 0
        %v736 = vsel %vm247, %v663, 0
        %v739 = vsel %vm247, %v664, 0
        %v742 = vsel %vm247, %v665, 0
        %v745 = vsel %vm247, %v666, 0
        %v748 = vsel %vm247, %v667, 0
        %v751 = vsel %vm247, %v668, 0
        %v754 = vsel %vm247, %v669, 0
        %v757 = vsel %vm247, %v670, 0
        %v760 = vsel %vm247, %v671, 0
        %v763 = vsel %vm247, %v672, 0
        %765 = vmatpush.msra.mxu0 0.0
        %766 = vmatpush.msra.mxu0 0.0
        %767 = vmatpush.msra.mxu0 0.0
        %768 = vmatpush.msra.mxu0 0.0
        %769 = vmatpush.msra.mxu0 0.0
        %770 = vmatpush.msra.mxu0 0.0
        %771 = vmatpush.msra.mxu0 0.0
        %772 = vmatpush.msra.mxu0 0.0
        %773 = vmatpush.msra.mxu0 0.0
        %774 = vmatpush.msra.mxu0 0.0
        %775 = vmatpush.msra.mxu0 0.0
        %776 = vmatpush.msra.mxu0 0.0
        %777 = vmatpush.msra.mxu0 0.0
        %778 = vmatpush.msra.mxu0 0.0
        %779 = vmatpush.msra.mxu0 0.0
        %780 = vmatpush.msra.mxu0 %v674
        %781 = vmatmul.f32.gmra.mxu0 %v676
        %v782 = vpop.f32.mrf.mxu0
        %v783 = vadd.f32 0.0, %v782
        %784 = vmatmul.f32.gmra.mxu0 %v679
        %v785 = vpop.f32.mrf.mxu0
        %v786 = vadd.f32 0.0, %v785
        %787 = vmatmul.f32.gmra.mxu0 %v682
        %v788 = vpop.f32.mrf.mxu0
        %v789 = vadd.f32 0.0, %v788
        %790 = vmatmul.f32.gmra.mxu0 %v685
        %v791 = vpop.f32.mrf.mxu0
        %v792 = vadd.f32 0.0, %v791
        %793 = vmatmul.f32.gmra.mxu0 %v688
        %v794 = vpop.f32.mrf.mxu0
        %v795 = vadd.f32 0.0, %v794
        %796 = vmatmul.f32.gmra.mxu0 %v691
        %v797 = vpop.f32.mrf.mxu0
        %v798 = vadd.f32 0.0, %v797
        %799 = vmatmul.f32.gmra.mxu0 %v694
        %v800 = vpop.f32.mrf.mxu0
        %v801 = vadd.f32 0.0, %v800
        %802 = vmatmul.f32.gmra.mxu0 %v697
        %v803 = vpop.f32.mrf.mxu0
        %v804 = vadd.f32 0.0, %v803
        %805 = vmatmul.f32.gmra.mxu0 %v700
        %v806 = vpop.f32.mrf.mxu0
        %v807 = vadd.f32 0.0, %v806
        %808 = vmatmul.f32.gmra.mxu0 %v703
        %v809 = vpop.f32.mrf.mxu0
        %v810 = vadd.f32 0.0, %v809
        %811 = vmatmul.f32.gmra.mxu0 %v706
        %v812 = vpop.f32.mrf.mxu0
        %v813 = vadd.f32 0.0, %v812
        %814 = vmatmul.f32.gmra.mxu0 %v709
        %v815 = vpop.f32.mrf.mxu0
        %v816 = vadd.f32 0.0, %v815
        %817 = vmatmul.f32.gmra.mxu0 %v712
        %v818 = vpop.f32.mrf.mxu0
        %v819 = vadd.f32 0.0, %v818
        %820 = vmatmul.f32.gmra.mxu0 %v715
        %v821 = vpop.f32.mrf.mxu0
        %v822 = vadd.f32 0.0, %v821
        %823 = vmatmul.f32.gmra.mxu0 %v718
        %v824 = vpop.f32.mrf.mxu0
        %v825 = vadd.f32 0.0, %v824
        %826 = vmatmul.f32.gmra.mxu0 %v721
        %v827 = vpop.f32.mrf.mxu0
        %v828 = vadd.f32 0.0, %v827
        %829 = vmatmul.f32.gmra.mxu0 %v724
        %v830 = vpop.f32.mrf.mxu0
        %v831 = vadd.f32 0.0, %v830
        %832 = vmatmul.f32.gmra.mxu0 %v727
        %v833 = vpop.f32.mrf.mxu0
        %v834 = vadd.f32 0.0, %v833
        %835 = vmatmul.f32.gmra.mxu0 %v730
        %v836 = vpop.f32.mrf.mxu0
        %v837 = vadd.f32 0.0, %v836
        %838 = vmatmul.f32.gmra.mxu0 %v733
        %v839 = vpop.f32.mrf.mxu0
        %v840 = vadd.f32 0.0, %v839
        %841 = vmatmul.f32.gmra.mxu0 %v736
        %v842 = vpop.f32.mrf.mxu0
        %v843 = vadd.f32 0.0, %v842
        %844 = vmatmul.f32.gmra.mxu0 %v739
        %v845 = vpop.f32.mrf.mxu0
        %v846 = vadd.f32 0.0, %v845
        %847 = vmatmul.f32.gmra.mxu0 %v742
        %v848 = vpop.f32.mrf.mxu0
        %v849 = vadd.f32 0.0, %v848
        %850 = vmatmul.f32.gmra.mxu0 %v745
        %v851 = vpop.f32.mrf.mxu0
        %v852 = vadd.f32 0.0, %v851
        %853 = vmatmul.f32.gmra.mxu0 %v748
        %v854 = vpop.f32.mrf.mxu0
        %v855 = vadd.f32 0.0, %v854
        %856 = vmatmul.f32.gmra.mxu0 %v751
        %v857 = vpop.f32.mrf.mxu0
        %v858 = vadd.f32 0.0, %v857
        %859 = vmatmul.f32.gmra.mxu0 %v754
        %v860 = vpop.f32.mrf.mxu0
        %v861 = vadd.f32 0.0, %v860
        %862 = vmatmul.f32.gmra.mxu0 %v757
        %v863 = vpop.f32.mrf.mxu0
        %v864 = vadd.f32 0.0, %v863
        %865 = vmatmul.f32.gmra.mxu0 %v760
        %v866 = vpop.f32.mrf.mxu0
        %v867 = vadd.f32 0.0, %v866
        %868 = vmatmul.f32.gmra.mxu0 %v763
        %v869 = vpop.f32.mrf.mxu0
        %v870 = vadd.f32 0.0, %v869
        %871 = vdwg.mxu0
        %v872 = vadd.f32 %v553, %v783
        %v873 = vadd.f32 %v556, %v786
        %v874 = vadd.f32 %v559, %v789
        %v875 = vadd.f32 %v562, %v792
        %v876 = vadd.f32 %v565, %v795
        %v877 = vadd.f32 %v568, %v798
        %v878 = vadd.f32 %v571, %v801
        %v879 = vadd.f32 %v574, %v804
        %v880 = vadd.f32 %v577, %v807
        %v881 = vadd.f32 %v580, %v810
        %v882 = vadd.f32 %v583, %v813
        %v883 = vadd.f32 %v586, %v816
        %v884 = vadd.f32 %v589, %v819
        %v885 = vadd.f32 %v592, %v822
        %v886 = vadd.f32 %v595, %v825
        %v887 = vadd.f32 %v598, %v828
        %v888 = vadd.f32 %v601, %v831
        %v889 = vadd.f32 %v604, %v834
        %v890 = vadd.f32 %v607, %v837
        %v891 = vadd.f32 %v610, %v840
        %v892 = vadd.f32 %v613, %v843
        %v893 = vadd.f32 %v616, %v846
        %v894 = vadd.f32 %v619, %v849
        %v895 = vadd.f32 %v622, %v852
        %v896 = vadd.f32 %v625, %v855
        %v897 = vadd.f32 %v628, %v858
        %v898 = vadd.f32 %v631, %v861
        %v899 = vadd.f32 %v634, %v864
        %v900 = vadd.f32 %v637, %v867
        %v901 = vadd.f32 %v640, %v870
        %v902 = vld [vmem:[%s642 + $0x1] sm:$0xff]
        %v903 = vld [vmem:[%s642 + $0x9] sm:$0xff]
        %v904 = vld [vmem:[%s642 + $0x19] sm:$0xff]
        %v905 = vld [vmem:[%s642 + $0x21] sm:$0xff]
        %v906 = vld [vmem:[%s642 + $0x31] sm:$0xff]
        %v907 = vld [vmem:[%s642 + $0x39] sm:$0xff]
        %v908 = vld [vmem:[%s642 + $0x49] sm:$0xff]
        %v909 = vld [vmem:[%s642 + $0x51] sm:$0xff]
        %v910 = vld [vmem:[%s642 + $0x61] sm:$0xff]
        %v911 = vld [vmem:[%s642 + $0x69] sm:$0xff]
        %v912 = vld [vmem:[%s642 + $0x79] sm:$0xff]
        %v913 = vld [vmem:[%s642 + $0x81] sm:$0xff]
        %v914 = vld [vmem:[%s642 + $0x91] sm:$0xff]
        %v915 = vld [vmem:[%s642 + $0x99] sm:$0xff]
        %v916 = vld [vmem:[%s642 + $0xa9] sm:$0xff]
        %v917 = vld [vmem:[%s642 + $0xb1] sm:$0xff]
        %v918 = vld [vmem:[%s642 + $0xc1] sm:$0xff]
        %v919 = vld [vmem:[%s642 + $0xc9] sm:$0xff]
        %v920 = vld [vmem:[%s642 + $0xd9] sm:$0xff]
        %v921 = vld [vmem:[%s642 + $0xe1] sm:$0xff]
        %v922 = vld [vmem:[%s642 + $0xf1] sm:$0xff]
        %v923 = vld [vmem:[%s642 + $0xf9] sm:$0xff]
        %v924 = vld [vmem:[%s642 + $0x109] sm:$0xff]
        %v925 = vld [vmem:[%s642 + $0x111] sm:$0xff]
        %v926 = vld [vmem:[%s642 + $0x121] sm:$0xff]
        %v927 = vld [vmem:[%s642 + $0x129] sm:$0xff]
        %v928 = vld [vmem:[%s642 + $0x139] sm:$0xff]
        %v929 = vld [vmem:[%s642 + $0x141] sm:$0xff]
        %v930 = vld [vmem:[%s642 + $0x151] sm:$0xff]
        %v931 = vld [vmem:[%s642 + $0x159] sm:$0xff]
        %s932 = scalar_lea.vmem %s1, 24
        %v933 = vld [vmem:[%s932] sm:$0xff]
        %v935 = vsel %vm247, %v902, 0
        %v938 = vsel %vm247, %v903, 0
        %v941 = vsel %vm247, %v904, 0
        %v944 = vsel %vm247, %v905, 0
        %v947 = vsel %vm247, %v906, 0
        %v950 = vsel %vm247, %v907, 0
        %v953 = vsel %vm247, %v908, 0
        %v956 = vsel %vm247, %v909, 0
        %v959 = vsel %vm247, %v910, 0
        %v962 = vsel %vm247, %v911, 0
        %v965 = vsel %vm247, %v912, 0
        %v968 = vsel %vm247, %v913, 0
        %v971 = vsel %vm247, %v914, 0
        %v974 = vsel %vm247, %v915, 0
        %v977 = vsel %vm247, %v916, 0
        %v980 = vsel %vm247, %v917, 0
        %v983 = vsel %vm247, %v918, 0
        %v986 = vsel %vm247, %v919, 0
        %v989 = vsel %vm247, %v920, 0
        %v992 = vsel %vm247, %v921, 0
        %v995 = vsel %vm247, %v922, 0
        %v998 = vsel %vm247, %v923, 0
        %v1001 = vsel %vm247, %v924, 0
        %v1004 = vsel %vm247, %v925, 0
        %v1007 = vsel %vm247, %v926, 0
        %v1010 = vsel %vm247, %v927, 0
        %v1013 = vsel %vm247, %v928, 0
        %v1016 = vsel %vm247, %v929, 0
        %v1019 = vsel %vm247, %v930, 0
        %v1022 = vsel %vm247, %v931, 0
        %1024 = vmatpush.msra.mxu0 0.0
        %1025 = vmatpush.msra.mxu0 0.0
        %1026 = vmatpush.msra.mxu0 0.0
        %1027 = vmatpush.msra.mxu0 0.0
        %1028 = vmatpush.msra.mxu0 0.0
        %1029 = vmatpush.msra.mxu0 0.0
        %1030 = vmatpush.msra.mxu0 0.0
        %1031 = vmatpush.msra.mxu0 0.0
        %1032 = vmatpush.msra.mxu0 0.0
        %1033 = vmatpush.msra.mxu0 0.0
        %1034 = vmatpush.msra.mxu0 0.0
        %1035 = vmatpush.msra.mxu0 0.0
        %1036 = vmatpush.msra.mxu0 0.0
        %1037 = vmatpush.msra.mxu0 0.0
        %1038 = vmatpush.msra.mxu0 0.0
        %1039 = vmatpush.msra.mxu0 %v933
        %1040 = vmatmul.f32.gmra.mxu0 %v935
        %v1041 = vpop.f32.mrf.mxu0
        %v1042 = vadd.f32 0.0, %v1041
        %1043 = vmatmul.f32.gmra.mxu0 %v938
        %v1044 = vpop.f32.mrf.mxu0
        %v1045 = vadd.f32 0.0, %v1044
        %1046 = vmatmul.f32.gmra.mxu0 %v941
        %v1047 = vpop.f32.mrf.mxu0
        %v1048 = vadd.f32 0.0, %v1047
        %1049 = vmatmul.f32.gmra.mxu0 %v944
        %v1050 = vpop.f32.mrf.mxu0
        %v1051 = vadd.f32 0.0, %v1050
        %1052 = vmatmul.f32.gmra.mxu0 %v947
        %v1053 = vpop.f32.mrf.mxu0
        %v1054 = vadd.f32 0.0, %v1053
        %1055 = vmatmul.f32.gmra.mxu0 %v950
        %v1056 = vpop.f32.mrf.mxu0
        %v1057 = vadd.f32 0.0, %v1056
        %1058 = vmatmul.f32.gmra.mxu0 %v953
        %v1059 = vpop.f32.mrf.mxu0
        %v1060 = vadd.f32 0.0, %v1059
        %1061 = vmatmul.f32.gmra.mxu0 %v956
        %v1062 = vpop.f32.mrf.mxu0
        %v1063 = vadd.f32 0.0, %v1062
        %1064 = vmatmul.f32.gmra.mxu0 %v959
        %v1065 = vpop.f32.mrf.mxu0
        %v1066 = vadd.f32 0.0, %v1065
        %1067 = vmatmul.f32.gmra.mxu0 %v962
        %v1068 = vpop.f32.mrf.mxu0
        %v1069 = vadd.f32 0.0, %v1068
        %1070 = vmatmul.f32.gmra.mxu0 %v965
        %v1071 = vpop.f32.mrf.mxu0
        %v1072 = vadd.f32 0.0, %v1071
        %1073 = vmatmul.f32.gmra.mxu0 %v968
        %v1074 = vpop.f32.mrf.mxu0
        %v1075 = vadd.f32 0.0, %v1074
        %1076 = vmatmul.f32.gmra.mxu0 %v971
        %v1077 = vpop.f32.mrf.mxu0
        %v1078 = vadd.f32 0.0, %v1077
        %1079 = vmatmul.f32.gmra.mxu0 %v974
        %v1080 = vpop.f32.mrf.mxu0
        %v1081 = vadd.f32 0.0, %v1080
        %1082 = vmatmul.f32.gmra.mxu0 %v977
        %v1083 = vpop.f32.mrf.mxu0
        %v1084 = vadd.f32 0.0, %v1083
        %1085 = vmatmul.f32.gmra.mxu0 %v980
        %v1086 = vpop.f32.mrf.mxu0
        %v1087 = vadd.f32 0.0, %v1086
        %1088 = vmatmul.f32.gmra.mxu0 %v983
        %v1089 = vpop.f32.mrf.mxu0
        %v1090 = vadd.f32 0.0, %v1089
        %1091 = vmatmul.f32.gmra.mxu0 %v986
        %v1092 = vpop.f32.mrf.mxu0
        %v1093 = vadd.f32 0.0, %v1092
        %1094 = vmatmul.f32.gmra.mxu0 %v989
        %v1095 = vpop.f32.mrf.mxu0
        %v1096 = vadd.f32 0.0, %v1095
        %1097 = vmatmul.f32.gmra.mxu0 %v992
        %v1098 = vpop.f32.mrf.mxu0
        %v1099 = vadd.f32 0.0, %v1098
        %1100 = vmatmul.f32.gmra.mxu0 %v995
        %v1101 = vpop.f32.mrf.mxu0
        %v1102 = vadd.f32 0.0, %v1101
        %1103 = vmatmul.f32.gmra.mxu0 %v998
        %v1104 = vpop.f32.mrf.mxu0
        %v1105 = vadd.f32 0.0, %v1104
        %1106 = vmatmul.f32.gmra.mxu0 %v1001
        %v1107 = vpop.f32.mrf.mxu0
        %v1108 = vadd.f32 0.0, %v1107
        %1109 = vmatmul.f32.gmra.mxu0 %v1004
        %v1110 = vpop.f32.mrf.mxu0
        %v1111 = vadd.f32 0.0, %v1110
        %1112 = vmatmul.f32.gmra.mxu0 %v1007
        %v1113 = vpop.f32.mrf.mxu0
        %v1114 = vadd.f32 0.0, %v1113
        %1115 = vmatmul.f32.gmra.mxu0 %v1010
        %v1116 = vpop.f32.mrf.mxu0
        %v1117 = vadd.f32 0.0, %v1116
        %1118 = vmatmul.f32.gmra.mxu0 %v1013
        %v1119 = vpop.f32.mrf.mxu0
        %v1120 = vadd.f32 0.0, %v1119
        %1121 = vmatmul.f32.gmra.mxu0 %v1016
        %v1122 = vpop.f32.mrf.mxu0
        %v1123 = vadd.f32 0.0, %v1122
        %1124 = vmatmul.f32.gmra.mxu0 %v1019
        %v1125 = vpop.f32.mrf.mxu0
        %v1126 = vadd.f32 0.0, %v1125
        %1127 = vmatmul.f32.gmra.mxu0 %v1022
        %v1128 = vpop.f32.mrf.mxu0
        %v1129 = vadd.f32 0.0, %v1128
        %1130 = vdwg.mxu0
        %v1131 = vadd.f32 %v872, %v1042
        %v1132 = vadd.f32 %v873, %v1045
        %v1133 = vadd.f32 %v874, %v1048
        %v1134 = vadd.f32 %v875, %v1051
        %v1135 = vadd.f32 %v876, %v1054
        %v1136 = vadd.f32 %v877, %v1057
        %v1137 = vadd.f32 %v878, %v1060
        %v1138 = vadd.f32 %v879, %v1063
        %v1139 = vadd.f32 %v880, %v1066
        %v1140 = vadd.f32 %v881, %v1069
        %v1141 = vadd.f32 %v882, %v1072
        %v1142 = vadd.f32 %v883, %v1075
        %v1143 = vadd.f32 %v884, %v1078
        %v1144 = vadd.f32 %v885, %v1081
        %v1145 = vadd.f32 %v886, %v1084
        %v1146 = vadd.f32 %v887, %v1087
        %v1147 = vadd.f32 %v888, %v1090
        %v1148 = vadd.f32 %v889, %v1093
        %v1149 = vadd.f32 %v890, %v1096
        %v1150 = vadd.f32 %v891, %v1099
        %v1151 = vadd.f32 %v892, %v1102
        %v1152 = vadd.f32 %v893, %v1105
        %v1153 = vadd.f32 %v894, %v1108
        %v1154 = vadd.f32 %v895, %v1111
        %v1155 = vadd.f32 %v896, %v1114
        %v1156 = vadd.f32 %v897, %v1117
        %v1157 = vadd.f32 %v898, %v1120
        %v1158 = vadd.f32 %v899, %v1123
        %v1159 = vadd.f32 %v900, %v1126
        %v1160 = vadd.f32 %v901, %v1129
        %v1161 = vld [vmem:[%s2] sm:$0x1]
        %v1163 = vperm.slane %v1161, 0
        %v1165 = vadd.f32 %v1131, %v1163
        %v1166 = vadd.f32 %v1132, %v1163
        %v1167 = vadd.f32 %v1133, %v1163
        %v1168 = vadd.f32 %v1134, %v1163
        %v1169 = vadd.f32 %v1135, %v1163
        %v1170 = vadd.f32 %v1136, %v1163
        %v1171 = vadd.f32 %v1137, %v1163
        %v1172 = vadd.f32 %v1138, %v1163
        %v1173 = vadd.f32 %v1139, %v1163
        %v1174 = vadd.f32 %v1140, %v1163
        %v1175 = vadd.f32 %v1141, %v1163
        %v1176 = vadd.f32 %v1142, %v1163
        %v1177 = vadd.f32 %v1143, %v1163
        %v1178 = vadd.f32 %v1144, %v1163
        %v1179 = vadd.f32 %v1145, %v1163
        %v1180 = vadd.f32 %v1146, %v1163
        %v1181 = vadd.f32 %v1147, %v1163
        %v1182 = vadd.f32 %v1148, %v1163
        %v1183 = vadd.f32 %v1149, %v1163
        %v1184 = vadd.f32 %v1150, %v1163
        %v1185 = vadd.f32 %v1151, %v1163
        %v1186 = vadd.f32 %v1152, %v1163
        %v1187 = vadd.f32 %v1153, %v1163
        %v1188 = vadd.f32 %v1154, %v1163
        %v1189 = vadd.f32 %v1155, %v1163
        %v1190 = vadd.f32 %v1156, %v1163
        %v1191 = vadd.f32 %v1157, %v1163
        %v1192 = vadd.f32 %v1158, %v1163
        %v1193 = vadd.f32 %v1159, %v1163
        %v1194 = vadd.f32 %v1160, %v1163
        %1195 = vst [vmem:[%s177] sm:$0xff] %v1165
        %1196 = vst [vmem:[%s177 + $0x8] sm:$0xff] %v1166
        %1197 = vst [vmem:[%s177 + $0x10] sm:$0xff] %v1167
        %1198 = vst [vmem:[%s177 + $0x18] sm:$0xff] %v1168
        %1199 = vst [vmem:[%s177 + $0x20] sm:$0xff] %v1169
        %1200 = vst [vmem:[%s177 + $0x28] sm:$0xff] %v1170
        %1201 = vst [vmem:[%s177 + $0x30] sm:$0xff] %v1171
        %1202 = vst [vmem:[%s177 + $0x38] sm:$0xff] %v1172
        %1203 = vst [vmem:[%s177 + $0x40] sm:$0xff] %v1173
        %1204 = vst [vmem:[%s177 + $0x48] sm:$0xff] %v1174
        %1205 = vst [vmem:[%s177 + $0x50] sm:$0xff] %v1175
        %1206 = vst [vmem:[%s177 + $0x58] sm:$0xff] %v1176
        %1207 = vst [vmem:[%s177 + $0x60] sm:$0xff] %v1177
        %1208 = vst [vmem:[%s177 + $0x68] sm:$0xff] %v1178
        %1209 = vst [vmem:[%s177 + $0x70] sm:$0xff] %v1179
        %1210 = vst [vmem:[%s177 + $0x78] sm:$0xff] %v1180
        %1211 = vst [vmem:[%s177 + $0x80] sm:$0xff] %v1181
        %1212 = vst [vmem:[%s177 + $0x88] sm:$0xff] %v1182
        %1213 = vst [vmem:[%s177 + $0x90] sm:$0xff] %v1183
        %1214 = vst [vmem:[%s177 + $0x98] sm:$0xff] %v1184
        %1215 = vst [vmem:[%s177 + $0xa0] sm:$0xff] %v1185
        %1216 = vst [vmem:[%s177 + $0xa8] sm:$0xff] %v1186
        %1217 = vst [vmem:[%s177 + $0xb0] sm:$0xff] %v1187
        %1218 = vst [vmem:[%s177 + $0xb8] sm:$0xff] %v1188
        %1219 = vst [vmem:[%s177 + $0xc0] sm:$0xff] %v1189
        %1220 = vst [vmem:[%s177 + $0xc8] sm:$0xff] %v1190
        %1221 = vst [vmem:[%s177 + $0xd0] sm:$0xff] %v1191
        %1222 = vst [vmem:[%s177 + $0xd8] sm:$0xff] %v1192
        %1223 = vst [vmem:[%s177 + $0xe0] sm:$0xff] %v1193
        %1224 = vst [vmem:[%s177 + $0xe8] sm:$0xff] %v1194
        %s1225 = sand.u32 %s107, 1
        %s1226 = scalar_lea.sflag [#allocation3], %s1225
        %s1227 = sand.u32 %s107, 1
        %s1228 = smul.addr %s1227, 240
        %s1229 = scalar_lea.vmem [#allocation2], %s1228
        // Predicated region
        $region33: #{tpu_custom_call.1} parent=31 // pred_check
          %p1230 = pneg %p117
        $region34: #{tpu_custom_call.1} parent=31 // pred_check_branch
          %1232 = sbr.rel (%p1230) target = $region36
        $region35: #{tpu_custom_call.1} parent=31 // pred_region
          %s1233 = smul.u32 15, %s22
          %1235 = vsyncadd %s1226, 0
          %s1236 = smul.addr %s1233, 2
          %s1237 = smul.addr %s21, 30
          %s1238 = sadd.s32 %s1236, %s1237
          %s1239 = smul.addr %s1238, 8
          %s1240 = scalar_lea.hbm %s3, %s1239
          %s1241 = sshll.u32 %s1229, 4
          %s1242 = int_to_ptr.vmem [resolvable:$true] %s1241
          %s1243 = sshll.u32 %s1240, 4
          %s1244 = int_to_ptr.hbm [resolvable:$true] %s1243
          %1249 = dma.vmem_to_hbm [thread:$0]  %s1242, 3840, %s1244, %s1226, 128, 128, 8
        $region36: #{tpu_custom_call.1} parent=31 // pred_fallthru
          _
      $region32: #{tpu_custom_call.1} parent=5 // pred_fallthru
        _
      %p1250 = scmp.le.s32.totalorder 2, %s12
      // Predicated region
      $region37: #{tpu_custom_call.1} parent=5 // pred_check
        %p1251 = pneg %p1250
      $region38: #{tpu_custom_call.1} parent=5 // pred_check_branch
        %1253 = sbr.rel (%p1251) target = $region40
      $region39: #{tpu_custom_call.1} parent=5 // pred_region
        %s1254 = ssub.s32 %s12, 2
        // Predicated region
        $region41: #{tpu_custom_call.1} parent=39 // pred_check
          %p1255 = pneg %p123
        $region42: #{tpu_custom_call.1} parent=39 // pred_check_branch
          %1257 = sbr.rel (%p1255) target = $region44
        $region43: #{tpu_custom_call.1} parent=39 // pred_region
          %s1258 = sand.u32 %s108, 1
          %s1259 = scalar_lea.sflag [#allocation3], %s1258
          %s1260 = sand.u32 %s108, 1
          %s1261 = smul.addr %s1260, 240
          %s1262 = scalar_lea.vmem [#allocation2], %s1261
          %1264 = dma.done %s1259, 3840
        $region44: #{tpu_custom_call.1} parent=39 // pred_fallthru
          _
      $region40: #{tpu_custom_call.1} parent=5 // pred_fallthru
        _
    $region6: #{tpu_custom_call.1} parent=1 // loop_footer
      %s16 = sadd.s32 1, %s12
    $region7: #{tpu_custom_call.1} parent=1 // loop_footer_branch
      %11 = sbr.rel target = $region3
    $region8: #{tpu_custom_call.1} parent=1 // loop_exit
      _
    %1265 = vsyncpa [#allocation3], 1
    %s1266 = scalar_lea.sflag [#allocation3], 1
    %1267 = vsyncpa %s1266, 1

</llo_original>
